<compile_context>
chip_gen: v7x
topology: tpu7x:2x2x1
jax: 0.10.0
libtpu: 0.0.40
codegen_flags: <defaults>
</compile_context>

<pallas_src>
import jax
import jax.numpy as jnp
import numpy as np
from jax import lax
from jax.experimental import pallas as pl
from jax.experimental.pallas import tpu as pltpu

EPS = 1e-5
LEAKY_SLOPE = 0.01


def _round_up(n, m):
    return ((n + m - 1) // m) * m


_ROLL_PROBE = None  # (np_convention: bool, bf16_roll_ok: bool)


def _probe_roll():
    """One-time on-device probe of pltpu.roll.

    Determines (a) whether roll follows np.roll's convention
    (out[:, c] = in[:, c - s]) and (b) whether a lane roll of a bf16 operand
    lowers cleanly, so the kernel can roll bf16 taps (half the XLU / store
    bytes) and fall back to f32 rolls + per-tap casts otherwise.
    """
    global _ROLL_PROBE
    if _ROLL_PROBE is not None:
        return _ROLL_PROBE

    def run(dtype, rows):
        def k(x_ref, o_ref):
            o_ref[...] = pltpu.roll(x_ref[...], 1, axis=1)

        x = jnp.tile(jnp.arange(128, dtype=jnp.float32)[None, :], (rows, 1)).astype(dtype)
        y = pl.pallas_call(
            k,
            out_shape=jax.ShapeDtypeStruct((rows, 128), dtype),
            in_specs=[pl.BlockSpec(memory_space=pltpu.MemorySpace.VMEM)],
            out_specs=pl.BlockSpec(memory_space=pltpu.MemorySpace.VMEM),
        )(x)
        return np.asarray(jax.device_get(y)).astype(np.float32)

    bf16_ok = True
    np_conv = True
    try:
        yb = run(jnp.bfloat16, 16)
        if yb[0, 1] == 0.0:          # out[c] = in[c-1]  -> np.roll convention
            np_conv = True
        elif yb[0, 0] == 1.0:        # out[c] = in[c+1]  -> reversed convention
            np_conv = False
        else:                        # unexpected result -> don't trust bf16 roll
            bf16_ok = False
    except Exception:
        bf16_ok = False
    if not bf16_ok:
        yf = run(jnp.float32, 8)
        np_conv = bool(yf[0, 1] == 0.0)
    _ROLL_PROBE = (np_conv, bf16_ok)
    return _ROLL_PROBE


def _vmem_limit_bytes():
    """Generation-aware VMEM budget: ~7/8 of reported capacity, 32 MiB fallback."""
    try:
        info = pltpu.get_tpu_info()
        cap = getattr(info, "vmem_capacity_bytes", None)
        if cap:
            return int(min(cap * 7 // 8, 112 * 1024 * 1024))
    except Exception:
        pass
    return 32 * 1024 * 1024


def _make_tcn_kernel(layer_cfgs, K, W, n_valid, roll_np, roll_bf16):
    """Fused kernel over all TemporalBlocks. Activation layout: (C_pad, W) f32."""
    inv_n = 1.0 / float(n_valid)

    # The cyclic-roll trick requires every causal shift to stay inside the
    # per-example left padding P (and the pad/tail columns to be re-zeroed by
    # `* mask` before each conv).  Assert the invariant at trace time so a
    # future per-layer padding change cannot silently read cross-example data.
    max_dil = max(int(c["dilation"]) for c in layer_cfgs)
    P = (K - 1) * max_dil
    for c in layer_cfgs:
        assert (K - 1) * int(c["dilation"]) <= P, "causal shift exceeds padding"

    def leaky(v):
        # valid because 0 < slope < 1: max(v, s*v) == leaky_relu(v)
        return jnp.maximum(v, LEAKY_SLOPE * v)

    def shifted(v, s):
        # causal shift: out[:, c] = v[:, c - s].  Wrapped / cross-example columns
        # only ever land in per-example padding (s <= P), which stays masked.
        if s == 0:
            return v
        amt = s if roll_np else (W - s)
        return pltpu.roll(v, amt, axis=1)

    def kernel(mask_ref, x_ref, *rest):
        taps_ref = rest[-1]          # (K*Cmax_p, W) bf16 persistent staging scratch
        out_ref = rest[-2]
        prefs = rest[:-2]

        mask = mask_ref[...]         # (1, W) f32; 1.0 on real (batch, time) columns

        # Hoisted full-width masks (one broadcast per distinct channel width;
        # JAX does not CSE broadcast_in_dim, the Python layer loop is unrolled).
        mask_cache = {}

        def mask_for(rows):
            if rows not in mask_cache:
                mask_cache[rows] = pl.broadcast_to(mask, (rows, W))
            return mask_cache[rows]

        def batchnorm(v, g, b, maskb):
            # Training-mode BN over the valid (batch, time) columns only; padding
            # is zeroed by the mask so one fused sum / sum-of-squares pass
            # suffices.  The affine is folded into per-channel scale/shift so only
            # `v*scale + shift` touches the full slab.
            # NOTE: var = E[x^2] - E[x]^2 in f32; EPS guards the rsqrt if it goes
            # marginally negative.  Switch to a shifted/two-pass form if channel
            # counts grow or tolerances tighten.
            vm = v * maskb
            s1 = jnp.sum(vm, axis=1, keepdims=True)
            s2 = jnp.sum(vm * vm, axis=1, keepdims=True)
            m = s1 * inv_n
            var = s2 * inv_n - m * m
            scale = g * lax.rsqrt(var + EPS)
            shift = b - m * scale
            return v * scale + shift

        def conv(src_f32, w, cin_rows, dilation):
            # Stage the K causally shifted taps as bf16 into the shared scratch,
            # then contract with the (Cout_p, K*Cin_p) weights in a single bf16
            # MXU matmul (f32 accumulate).  Cast once, roll bf16 when supported.
            if roll_bf16:
                base = src_f32.astype(jnp.bfloat16)
                for j in range(K):
                    s = (K - 1 - j) * dilation
                    taps_ref[j * cin_rows:(j + 1) * cin_rows, :] = shifted(base, s)
            else:
                base = None
                for j in range(K):
                    s = (K - 1 - j) * dilation
                    taps_ref[j * cin_rows:(j + 1) * cin_rows, :] = (
                        shifted(src_f32, s).astype(jnp.bfloat16))
            stacked = taps_ref[0:K * cin_rows, :]
            return jnp.dot(w, stacked, preferred_element_type=jnp.float32), base

        h = x_ref[...]               # (C0_p, W) f32; zero in every pad column
        cin_rows = h.shape[0]
        idx = 0
        for cfg in layer_cfgs:
            w1 = prefs[idx][...]     # (Cout_p, K*Cin_p)  bf16
            w2 = prefs[idx + 1][...] # (Cout_p, K*Cout_p) bf16
            sc_ref = prefs[idx + 2]  # (Cout_p, 8) f32: [g1, be1, g2, be2, bd, ...]
            idx += 3
            d = int(cfg["dilation"])
            cout_rows = w1.shape[0]
            mo = mask_for(cout_rows)

            # conv1 bias is dropped: a per-channel constant before training-mode
            # BatchNorm is cancelled exactly by the mean subtraction.
            y1, hb = conv(h, w1, cin_rows, d)

            # Residual path (computed now, while the bf16 copy of h is live).
            if cfg["has_ds"]:
                wd = prefs[idx][...]  # (Cout_p, Cin_p) bf16
                idx += 1
                if hb is None:
                    hb = h.astype(jnp.bfloat16)
                res = (jnp.dot(wd, hb, preferred_element_type=jnp.float32)
                       + sc_ref[:, 4:5])
            else:
                res = h

            y = leaky(batchnorm(y1, sc_ref[:, 0:1], sc_ref[:, 1:2], mo)) * mo
            z1, _ = conv(y, w2, cout_rows, d)
            z = leaky(batchnorm(z1, sc_ref[:, 2:3], sc_ref[:, 3:4], mo))
            h = (z + res) * mo       # re-zero causal padding / lane tail
            cin_rows = cout_rows
        out_ref[...] = h

    return kernel


def init_tcn_params(key, num_inputs, num_channels, kernel_size):
    """Deterministic parameter init mirroring TemporalBlock.init_weights()."""
    params = []
    cin = num_inputs
    for i, cout in enumerate(num_channels):
        key, *ks = jax.random.split(key, 7)
        dilation = 2 ** i
        b1_bound = 1.0 / np.sqrt(cin * kernel_size)
        b2_bound = 1.0 / np.sqrt(cout * kernel_size)
        p = dict(
            dilation=dilation,
            w1=0.01 * jax.random.normal(ks[0], (cout, cin, kernel_size), jnp.float32),
            b1=jax.random.uniform(ks[1], (cout,), jnp.float32, -b1_bound, b1_bound),
            g1=jnp.ones((cout,), jnp.float32),
            be1=jnp.zeros((cout,), jnp.float32),
            w2=0.01 * jax.random.normal(ks[2], (cout, cout, kernel_size), jnp.float32),
            b2=jax.random.uniform(ks[3], (cout,), jnp.float32, -b2_bound, b2_bound),
            g2=jnp.ones((cout,), jnp.float32),
            be2=jnp.zeros((cout,), jnp.float32),
        )
        if cin != cout:
            bd_bound = 1.0 / np.sqrt(cin)
            p['wd'] = 0.01 * jax.random.normal(ks[4], (cout, cin), jnp.float32)
            p['bd'] = jax.random.uniform(ks[5], (cout,), jnp.float32, -bd_bound, bd_bound)
        params.append(p)
        cin = cout
    return params


def tcn_forward_pallas(x, params, kernel_size, seq_len):
    """x: (B, seq_total, num_inputs) -> (B, seq_len, num_channels[-1])."""
    B = x.shape[0]
    C0 = x.shape[2]
    L = int(seq_len)
    K = int(kernel_size)

    max_dil = max(int(p['dilation']) for p in params)
    P = (K - 1) * max_dil          # shared per-example causal left padding
    Lp = P + L
    W = _round_up(B * Lp, 128)     # lane-padded width (multiple of 128)
    n_valid = B * L

    # Input activation slab: (C0_p, W) f32 — channels padded to a multiple of 16
    # (bf16 packs (16,128) per vreg), P zeros in front of every example, zero
    # lane tail.
    c0_p = _round_up(C0, 16)
    src = x[:, :L, :]                                      # (B, L, C0)
    h0 = jnp.transpose(src, (2, 0, 1))                     # (C0, B, L)
    h0 = jnp.pad(h0, ((0, c0_p - C0), (0, 0), (P, 0)))     # (C0_p, B, Lp)
    h0 = h0.reshape(c0_p, B * Lp)
    h0 = jnp.pad(h0, ((0, 0), (0, W - B * Lp))).astype(jnp.float32)

    cols = np.arange(W)
    valid = (cols < B * Lp) & ((cols % Lp) >= P)
    mask = jnp.asarray(valid.astype(np.float32)).reshape(1, W)

    args = [mask, h0]
    layer_cfgs = []
    cin, cin_p = C0, c0_p
    cmax_p = c0_p
    for p in params:
        cout = int(p['w1'].shape[0])
        cout_p = _round_up(cout, 16)
        cmax_p = max(cmax_p, cout_p)
        d = int(p['dilation'])
        has_ds = 'wd' in p

        # Conv weights -> (Cout_p, K*Cin_p) bf16, tap-major, matching the staged
        # shifted-input layout built inside the kernel.
        w1t = jnp.transpose(p['w1'], (0, 2, 1))            # (cout, K, cin)
        w1s = jnp.pad(w1t, ((0, cout_p - cout), (0, 0), (0, cin_p - cin)))
        w1s = w1s.reshape(cout_p, K * cin_p).astype(jnp.bfloat16)

        w2t = jnp.transpose(p['w2'], (0, 2, 1))            # (cout, K, cout)
        w2s = jnp.pad(w2t, ((0, cout_p - cout), (0, 0), (0, cout_p - cout)))
        w2s = w2s.reshape(cout_p, K * cout_p).astype(jnp.bfloat16)

        # Packed per-channel scalars: [g1, be1, g2, be2, bd, 0, 0, 0].
        # conv1/conv2 biases are intentionally not passed (BN cancels them).
        sc = jnp.zeros((cout_p, 8), jnp.float32)
        sc = sc.at[:cout, 0].set(p['g1'])
        sc = sc.at[:cout, 1].set(p['be1'])
        sc = sc.at[:cout, 2].set(p['g2'])
        sc = sc.at[:cout, 3].set(p['be2'])
        if has_ds:
            sc = sc.at[:cout, 4].set(p['bd'])

        args += [w1s, w2s, sc]
        if has_ds:
            wd = jnp.pad(p['wd'], ((0, cout_p - cout), (0, cin_p - cin)))
            args.append(wd.astype(jnp.bfloat16))

        layer_cfgs.append(dict(dilation=d, has_ds=has_ds))
        cin, cin_p = cout, cout_p

    roll_np, roll_bf16 = _probe_roll()
    kernel = _make_tcn_kernel(layer_cfgs, K, W, n_valid, roll_np, roll_bf16)
    out = pl.pallas_call(
        kernel,
        out_shape=jax.ShapeDtypeStruct((cin_p, W), jnp.float32),
        in_specs=[pl.BlockSpec(memory_space=pltpu.MemorySpace.VMEM)] * len(args),
        out_specs=pl.BlockSpec(memory_space=pltpu.MemorySpace.VMEM),
        # One persistent bf16 tap-staging buffer shared by every conv of every layer.
        scratch_shapes=[pltpu.VMEM((K * cmax_p, W), jnp.bfloat16)],
        compiler_params=pltpu.CompilerParams(vmem_limit_bytes=_vmem_limit_bytes()),
    )(*args)

    # Strip channel / causal / lane padding; back to PyTorch output layout.
    out = out[:cin, :B * Lp].reshape(cin, B, Lp)[:, :, P:]    # (C_last, B, L)
    return jnp.transpose(out, (1, 2, 0))                      # (B, L, C_last)


def tcn_forward_ref(x, params, kernel_size, seq_len):
    """Pure-JAX reference mirroring the PyTorch forward.

    Matmul operands are rounded to bf16 (same as the kernel's MXU inputs) so the
    comparison isolates kernel mechanics (shifts, BN stats, residuals) from
    bf16 rounding.  Conv biases are included here; BN cancels them exactly.
    """
    L = seq_len
    h = jnp.transpose(x[:, :seq_len, :], (0, 2, 1))  # (B, C, L)

    def leaky(v):
        return jnp.where(v >= 0, v, LEAKY_SLOPE * v)

    def bn(v, g, b):
        m = jnp.mean(v, axis=(0, 2), keepdims=True)
        var = jnp.mean((v - m) ** 2, axis=(0, 2), keepdims=True)
        return (g[None, :, None] * (v - m) * lax.rsqrt(var + EPS)
                + b[None, :, None])

    for p in params:
        d = p['dilation']
        pad = (kernel_size - 1) * d

        def conv(v, w, b):
            vp = jnp.pad(v, ((0, 0), (0, 0), (pad, 0))).astype(jnp.bfloat16)
            wb = w.astype(jnp.bfloat16)
            out = jnp.zeros((v.shape[0], w.shape[0], L), jnp.float32)
            for j in range(kernel_size):
                out = out + jnp.einsum('oc,bcl->bol', wb[:, :, j],
                                       vp[:, :, j * d: j * d + L],
                                       preferred_element_type=jnp.float32)
            return out + b[None, :, None]

        out = leaky(bn(conv(h, p['w1'], p['b1']), p['g1'], p['be1']))
        out = leaky(bn(conv(out, p['w2'], p['b2']), p['g2'], p['be2']))
        if 'wd' in p:
            res = jnp.einsum('oc,bcl->bol', p['wd'].astype(jnp.bfloat16),
                             h.astype(jnp.bfloat16),
                             preferred_element_type=jnp.float32) + p['bd'][None, :, None]
        else:
            res = h
        h = out + res
    return jnp.transpose(h, (0, 2, 1))


if __name__ == "__main__":
    key = jax.random.PRNGKey(0)
    B, SEQ_TOTAL, SEQ_LEN = 2, 20, 16
    NUM_INPUTS = 4
    NUM_CHANNELS = (8, 8, 16)   # exercises both downsample and identity residual
    KERNEL_SIZE = 2

    kx, kp = jax.random.split(key)
    x = jax.random.normal(kx, (B, SEQ_TOTAL, NUM_INPUTS), jnp.float32)
    params = init_tcn_params(kp, NUM_INPUTS, NUM_CHANNELS, KERNEL_SIZE)

    out = tcn_forward_pallas(x, params, KERNEL_SIZE, SEQ_LEN)
    out = jax.block_until_ready(out)

    ref = tcn_forward_ref(x, params, KERNEL_SIZE, SEQ_LEN)
    assert out.shape == (B, SEQ_LEN, NUM_CHANNELS[-1])
    np.testing.assert_allclose(np.asarray(out), np.asarray(ref),
                               rtol=5e-3, atol=5e-4)

    print("KERNEL_OK")
</pallas_src>

<mosaic_0001>
module attributes {stable_mosaic.version = 11 : i64} {
  func.func @k(%arg0: memref<16x128xbf16, #tpu.memory_space<vmem>>, %arg1: memref<16x128xbf16, #tpu.memory_space<vmem>>) attributes {dimension_semantics = [], scalar_prefetch = 0 : i64, scratch_operands = 0 : i64, tpu.core_type = #tpu.core_type<tc>} {
    %c0 = arith.constant 0 : index
    %c0_0 = arith.constant 0 : index
    %0 = vector.load %arg0[%c0, %c0_0] : memref<16x128xbf16, #tpu.memory_space<vmem>>, vector<16x128xbf16>
    %c1_i32 = arith.constant 1 : i32
    %1 = tpu.dynamic_rotate %0 by %c1_i32 dim 1 : vector<16x128xbf16>, i32 -> vector<16x128xbf16>
    %c0_1 = arith.constant 0 : index
    %c0_2 = arith.constant 0 : index
    %2 = vector.load %arg1[%c0_1, %c0_2] : memref<16x128xbf16, #tpu.memory_space<vmem>>, vector<16x128xbf16>
    tpu.vector_store %arg1[%c0_1, %c0_2], %1 {strides = array<i32>} : memref<16x128xbf16, #tpu.memory_space<vmem>>, vector<16x128xbf16>,
    return
  }
}

module attributes {stable_mosaic.version = 11 : i64} {
  func.func @k(%arg0: memref<8x128xf32, #tpu.memory_space<vmem>>, %arg1: memref<8x128xf32, #tpu.memory_space<vmem>>) attributes {dimension_semantics = [], scalar_prefetch = 0 : i64, scratch_operands = 0 : i64, tpu.core_type = #tpu.core_type<tc>} {
    %c0 = arith.constant 0 : index
    %c0_0 = arith.constant 0 : index
    %0 = vector.load %arg0[%c0, %c0_0] : memref<8x128xf32, #tpu.memory_space<vmem>>, vector<8x128xf32>
    %c1_i32 = arith.constant 1 : i32
    %1 = tpu.dynamic_rotate %0 by %c1_i32 dim 1 : vector<8x128xf32>, i32 -> vector<8x128xf32>
    %c0_1 = arith.constant 0 : index
    %c0_2 = arith.constant 0 : index
    %2 = vector.load %arg1[%c0_1, %c0_2] : memref<8x128xf32, #tpu.memory_space<vmem>>, vector<8x128xf32>
    tpu.vector_store %arg1[%c0_1, %c0_2], %1 {strides = array<i32>} : memref<8x128xf32, #tpu.memory_space<vmem>>, vector<8x128xf32>,
    return
  }
}

</mosaic_0001>

<llo_original>
// kernel: tpu_custom_call.1
$region0: #{tpu_custom_call.1}
  #allocation0 [shape = 'u32[]', space=smem, size = 0x4, offset = 0x4, fixed_abs, tag = 'smem constant byte address 0x4 - core index']
  #allocation1 [shape = 'u32[144,128]{1,0:T(1,128)}', space=vmem, size = 0x12000, scoped, tag = 'internal scratch']
  %s0 = inlined_call_operand.hbm [shape: f32[8,128], index: 0, kind: input, shape index: {}]
  %s1 = inlined_call_operand.hbm [shape: f32[8,128], index: 1, kind: output, shape index: {}]
  %s2 = sld [smem:[#allocation0]]
  $region18: #{tpu_custom_call.1} parent=0
    _
  %s4 = ssub.s32 1, %s2
  %s5 = scalar_select 0, %s4, %s2
  $region1: #{tpu_custom_call.1} parent=0
    #allocation2 [shape = 'u8[4096]{0}', space=vmem, size = 0x1000, scoped, tag = 'input window, operand 0, single buffered']
    #allocation3 [shape = 's32[1]{0}', space=sflag, size = 0x4, scoped, tag = 'scoped memory for tpu_custom_call.1']
    #allocation4 [shape = 's32[1]{0}', space=sflag, size = 0x4, scoped, tag = 'scoped memory for tpu_custom_call.1']
    #allocation5 [shape = 'u8[4096]{0}', space=vmem, size = 0x1000, scoped, tag = 'output window, operand 0, single buffered']
    %6 = vsyncpa [#allocation3], 0
    %7 = vsyncpa [#allocation4], 0
    // Predicated region
    $region2: #{tpu_custom_call.1} parent=1 // pred_check
      _
    $region3: #{tpu_custom_call.1} parent=1 // pred_check_branch
      %9 = sbr.rel (0) target = $region5
    $region4: #{tpu_custom_call.1} parent=1 // pred_region
      %s11 = ssub.s32 128, 128
      %12 = vsyncadd [#allocation3], %s11
      %s14 = sshll.u32 [#allocation2], 4
      %s15 = int_to_ptr.vmem [resolvable:$true] %s14
      %17 = dma.hbm_to_vmem [thread:$0]  %s0, 128, %s15, [#allocation3]
    $region5: #{tpu_custom_call.1} parent=1 // pred_fallthru
      _
    // Predicated region
    $region6: #{tpu_custom_call.1} parent=1 // pred_check
      _
    $region7: #{tpu_custom_call.1} parent=1 // pred_check_branch
      %19 = sbr.rel (0) target = $region9
    $region8: #{tpu_custom_call.1} parent=1 // pred_region
      %20 = dma.done [#allocation3], 128
    $region9: #{tpu_custom_call.1} parent=1 // pred_fallthru
      _
    %v21 = vld [vmem:[#allocation2] sm:$0xff]
    %22 = vrot.lane.b32.xlu0 %v21, 1
    %v23 = vpop.permute.xlu0 %22
    %24 = vst [vmem:[#allocation5] sm:$0xff] %v23
    // Predicated region
    $region10: #{tpu_custom_call.1} parent=1 // pred_check
      _
    $region11: #{tpu_custom_call.1} parent=1 // pred_check_branch
      %26 = sbr.rel (0) target = $region13
    $region12: #{tpu_custom_call.1} parent=1 // pred_region
      %s28 = ssub.s32 128, 128
      %29 = vsyncadd [#allocation4], %s28
      %s31 = sshll.u32 [#allocation5], 4
      %s32 = int_to_ptr.vmem [resolvable:$true] %s31
      %34 = dma.vmem_to_hbm [thread:$0]  %s32, 128, %s1, [#allocation4]
    $region13: #{tpu_custom_call.1} parent=1 // pred_fallthru
      _
    // Predicated region
    $region14: #{tpu_custom_call.1} parent=1 // pred_check
      _
    $region15: #{tpu_custom_call.1} parent=1 // pred_check_branch
      %36 = sbr.rel (0) target = $region17
    $region16: #{tpu_custom_call.1} parent=1 // pred_region
      %37 = dma.done [#allocation4], 128
    $region17: #{tpu_custom_call.1} parent=1 // pred_fallthru
      _
    %38 = vsyncpa [#allocation3], 1
    %39 = vsyncpa [#allocation4], 1

</llo_original>
